<compile_context>
chip_gen: v5e
topology: v5e:2x2
jax: 0.10.0
libtpu: 0.0.40
codegen_flags: <defaults>
</compile_context>

<pallas_src>
import jax
import jax.numpy as jnp
from jax.experimental import pallas as pl
from jax.experimental.pallas import tpu as pltpu

N_DIMS = 3
N_TARGETS = 1

_LANE = 128
_MAX_TB = 131072  # rows per batch tile; 2 * (3 + L) * tb * 4 B ~= 5 MiB double-buffered


def _sig_shape_kernel(w_ref, b_ref, x_ref, o_ref):
    """w_ref: (n_dims,) f32 SMEM, b_ref: (n_targets,) f32 SMEM,
    x_ref: (tb, n_dims) f32 VMEM, o_ref: (tb, L) f32 VMEM."""
    x = x_ref[...]                                   # (tb, n_dims)
    n_dims = x.shape[1]
    L = o_ref.shape[1]
    # Degenerate (tb,3)x(3,1) contraction as VPU multiply-adds (scalars from
    # SMEM), statically unrolled -- no MXU, no parameter tiles.
    z = w_ref[0] * x[:, 0:1] + b_ref[0]              # (tb, 1)
    for k in range(1, n_dims):
        z = z + w_ref[k] * x[:, k:k + 1]
    s = jax.nn.sigmoid(z)                            # EUP, stays f32
    # Fused slice t[:, :L]: only the first L columns are computed and written.
    o_ref[...] = s + x[:, :L]                        # (tb,1)+(tb,L) broadcast


@jax.jit
def signature_shape_as_index(x, y, weight, bias):
    """x: (B, n_dims) f32, y: (B, L) f32 (only its static column count is used),
    weight: (n_targets, n_dims) f32, bias: (n_targets,) f32.
    Returns (sigmoid(x @ weight.T + bias) + x)[:, :L], shape (B, L)."""
    B, n_dims = x.shape
    L = y.shape[1]                                   # static Python int under tracing
    n_targets = weight.shape[0]
    # The torch broadcast add only type-checks for n_targets in {1, n_dims};
    # this kernel specializes the module default n_targets == 1.
    assert n_targets == 1, "kernel specializes n_targets == 1"
    assert L <= n_dims, "t only has n_dims columns"

    if B == 0 or L == 0:
        return jnp.zeros((B, L), dtype=jnp.float32)

    # 1-D SMEM weight avoids the (8,128)-word 2-D SMEM padding.
    w_flat = weight.reshape(n_dims)

    # Tile choice (no wrapper pad / transpose):
    #  * B <= _MAX_TB (covers the module's batch <= 1024 bound): one block whose
    #    shape equals the array shape -- single grid step, no padding at all.
    #  * Larger B: lane-multiple tiles with >= 2 grid steps so v7x's two
    #    TensorCores split the batch; Pallas masks the ragged last block itself.
    if B <= _MAX_TB:
        tb = B
    else:
        tb = min(_MAX_TB, pl.cdiv(pl.cdiv(B, 2), _LANE) * _LANE)
    grid = (pl.cdiv(B, tb),)

    cost = pl.CostEstimate(
        flops=(2 * n_dims + 2) * B,          # FMA dot + bias + broadcast add
        transcendentals=B,                   # sigmoid
        bytes_accessed=(n_dims + L) * B * 4, # read x, write out (params negligible)
    )

    return pl.pallas_call(
        _sig_shape_kernel,
        out_shape=jax.ShapeDtypeStruct((B, L), jnp.float32),
        grid=grid,
        in_specs=[
            pl.BlockSpec(memory_space=pltpu.MemorySpace.SMEM),   # weight (n_dims,)
            pl.BlockSpec(memory_space=pltpu.MemorySpace.SMEM),   # bias (n_targets,)
            pl.BlockSpec((tb, n_dims), lambda i: (i, 0)),        # x batch tile
        ],
        out_specs=pl.BlockSpec((tb, L), lambda i: (i, 0)),
        compiler_params=pltpu.CompilerParams(
            dimension_semantics=("parallel",),   # megacore split on v7x
        ),
        cost_estimate=cost,
    )(w_flat, bias, x)


if __name__ == "__main__":
    key = jax.random.PRNGKey(0)
    k_x, k_y, k_w, k_b = jax.random.split(key, 4)

    # Small shapes consistent with the module's example inputs: x (4, 3), y (4, 2).
    B, L = 4, 2
    x = jax.random.normal(k_x, (B, N_DIMS), dtype=jnp.float32) + 10.0
    y = jax.random.normal(k_y, (B, L), dtype=jnp.float32)

    # Deterministic parameter init (Linear(3, 1)): weight (1, 3), bias (1,).
    bound = 1.0 / (N_DIMS ** 0.5)
    weight = jax.random.uniform(k_w, (N_TARGETS, N_DIMS), jnp.float32, -bound, bound)
    bias = jax.random.uniform(k_b, (N_TARGETS,), jnp.float32, -bound, bound)
    # buff = [0.5] * n_targets is unused in forward; omitted from the kernel.

    out = jax.block_until_ready(signature_shape_as_index(x, y, weight, bias))

    # Reference check in plain JAX.
    t_ref = jax.nn.sigmoid(x @ weight.T + bias) + x
    ref = t_ref[:, :L]
    assert out.shape == (B, L), out.shape
    assert jnp.allclose(out, ref, atol=1e-5, rtol=1e-5), (out, ref)

    print("KERNEL_OK")
</pallas_src>

<mosaic_0001>
module attributes {stable_mosaic.version = 11 : i64} {
  func.func @_sig_shape_kernel(%arg0: i32, %arg1: memref<3xf32, #tpu.memory_space<smem>>, %arg2: memref<1xf32, #tpu.memory_space<smem>>, %arg3: memref<4x3xf32, #tpu.memory_space<vmem>>, %arg4: memref<4x2xf32, #tpu.memory_space<vmem>>) attributes {dimension_semantics = [#tpu.dimension_semantics<parallel>], iteration_bounds = array<i64: 1>, scalar_prefetch = 0 : i64, scratch_operands = 0 : i64, tpu.core_type = #tpu.core_type<tc>, window_params = [{transform_indices = @transform_0, window_bounds = array<i64: 3>}, {transform_indices = @transform_1, window_bounds = array<i64: 1>}, {transform_indices = @transform_2, window_bounds = array<i64: 4, 3>}, {transform_indices = @transform_3, window_bounds = array<i64: 4, 2>}]} {
    %c0 = arith.constant 0 : index
    %c0_0 = arith.constant 0 : index
    %0 = vector.load %arg3[%c0, %c0_0] : memref<4x3xf32, #tpu.memory_space<vmem>>, vector<4x3xf32>
    %c0_1 = arith.constant 0 : index
    %1 = memref.load %arg1[%c0_1] : memref<3xf32, #tpu.memory_space<smem>>
    %2 = vector.extract_strided_slice %0 {offsets = [0, 0], sizes = [4, 1], strides = [1, 1]} : vector<4x3xf32> to vector<4x1xf32>
    %3 = vector.broadcast %1 : f32 to vector<4x1xf32>
    %4 = arith.mulf %3, %2 : vector<4x1xf32>
    %c0_2 = arith.constant 0 : index
    %5 = memref.load %arg2[%c0_2] : memref<1xf32, #tpu.memory_space<smem>>
    %6 = vector.broadcast %5 : f32 to vector<4x1xf32>
    %7 = arith.addf %4, %6 : vector<4x1xf32>
    %c1 = arith.constant 1 : index
    %8 = memref.load %arg1[%c1] : memref<3xf32, #tpu.memory_space<smem>>
    %9 = vector.extract_strided_slice %0 {offsets = [0, 1], sizes = [4, 1], strides = [1, 1]} : vector<4x3xf32> to vector<4x1xf32>
    %10 = vector.broadcast %8 : f32 to vector<4x1xf32>
    %11 = arith.mulf %10, %9 : vector<4x1xf32>
    %12 = arith.addf %7, %11 : vector<4x1xf32>
    %c2 = arith.constant 2 : index
    %13 = memref.load %arg1[%c2] : memref<3xf32, #tpu.memory_space<smem>>
    %14 = vector.extract_strided_slice %0 {offsets = [0, 2], sizes = [4, 1], strides = [1, 1]} : vector<4x3xf32> to vector<4x1xf32>
    %15 = vector.broadcast %13 : f32 to vector<4x1xf32>
    %16 = arith.mulf %15, %14 : vector<4x1xf32>
    %17 = arith.addf %12, %16 : vector<4x1xf32>
    %18 = arith.negf %17 : vector<4x1xf32>
    %19 = math.exp %18 : vector<4x1xf32>
    %cst = arith.constant 1.000000e+00 : f32
    %20 = vector.broadcast %cst : f32 to vector<4x1xf32>
    %21 = arith.addf %20, %19 : vector<4x1xf32>
    %22 = arith.divf %20, %21 : vector<4x1xf32>
    %23 = vector.extract_strided_slice %0 {offsets = [0, 0], sizes = [4, 2], strides = [1, 1]} : vector<4x3xf32> to vector<4x2xf32>
    %24 = vector.broadcast %22 : vector<4x1xf32> to vector<4x2xf32>
    %25 = arith.addf %24, %23 : vector<4x2xf32>
    %c0_3 = arith.constant 0 : index
    %c0_4 = arith.constant 0 : index
    %26 = vector.load %arg4[%c0_3, %c0_4] : memref<4x2xf32, #tpu.memory_space<vmem>>, vector<4x2xf32>
    tpu.vector_store %arg4[%c0_3, %c0_4], %25 {strides = array<i32>} : memref<4x2xf32, #tpu.memory_space<vmem>>, vector<4x2xf32>,
    return
  }
  func.func @transform_0(%arg0: i32) -> i32 {
    %c0_i32 = arith.constant 0 : i32
    %c0_i32_0 = arith.constant 0 : i32
    return %c0_i32 : i32
  }
  func.func @transform_1(%arg0: i32) -> i32 {
    %c0_i32 = arith.constant 0 : i32
    %c0_i32_0 = arith.constant 0 : i32
    return %c0_i32 : i32
  }
  func.func @transform_2(%arg0: i32) -> (i32, i32) {
    %c0_i32 = arith.constant 0 : i32
    %c0_i32_0 = arith.constant 0 : i32
    return %arg0, %c0_i32 : i32, i32
  }
  func.func @transform_3(%arg0: i32) -> (i32, i32) {
    %c0_i32 = arith.constant 0 : i32
    %c0_i32_0 = arith.constant 0 : i32
    return %arg0, %c0_i32 : i32, i32
  }
}

</mosaic_0001>

<llo_original>
// kernel: signature_shape_as_index.1
$region0: #{signature_shape_as_index.1}
  #allocation0 [shape = 'u32[]', space=smem, size = 0x4, offset = 0x4, fixed_abs, tag = 'smem constant byte address 0x4 - core index']
  #allocation1 [shape = 'u32[72,128]{1,0:T(1,128)}', space=vmem, size = 0x9000, scoped, tag = 'internal scratch']
  #allocation2 [shape = 'f32[1]{0:T(128)S(6)}', space=smem, size = 0x200, scoped, tag = 'scoped memory for signature_shape_as_index.1']
  %s0 = inlined_call_operand.vmem [shape: f32[3], index: 0, kind: input, shape index: {}]
  %s1 = inlined_call_operand.<no memory space> [shape: f32[1], index: 1, kind: input, shape index: {}]
  %s2 = inlined_call_operand.hbm [shape: f32[4,3], index: 2, kind: input, shape index: {}]
  %s3 = inlined_call_operand.vmem [shape: f32[4,2], index: 3, kind: output, shape index: {}]
  %s4 = sld [smem:[#allocation0]]
  $region30: #{signature_shape_as_index.1} parent=0
    _
  %s6 = ssub.s32 1, %s4
  %s7 = scalar_select 0, %s6, %s4
  %8 = sst [smem:[#allocation2]] %s1
  $region1: #{signature_shape_as_index.1} parent=0
    #allocation3 [shape = 'u8[512]{0}', space=smem, size = 0x200, scoped, tag = 'input window, operand 0, single buffered']
    #allocation4 [shape = 's32[1]{0}', space=sflag, size = 0x4, scoped, tag = 'scoped memory for signature_shape_as_index.1']
    #allocation5 [shape = 's32[1]{0}', space=sflag, size = 0x4, scoped, tag = 'scoped memory for signature_shape_as_index.1']
    #allocation6 [shape = 'u8[2048]{0}', space=vmem, size = 0x800, scoped, tag = 'input window, operand 2, single buffered']
    %9 = vsyncpa [#allocation5], 0
    %10 = vsyncpa [#allocation4], 0
    // Predicated region
    $region2: #{signature_shape_as_index.1} parent=1 // pred_check
      _
    $region3: #{signature_shape_as_index.1} parent=1 // pred_check_branch
      %12 = sbr.rel (0) target = $region5
    $region4: #{signature_shape_as_index.1} parent=1 // pred_region
      %14 = vsyncadd [#allocation5], 0
      %s16 = sshll.u32 %s0, 4
      %s17 = int_to_ptr.vmem [resolvable:$true] %s16
      %19 = dma.vmem_to_smem %s17, 16, [#allocation3], [#allocation5]
    $region5: #{signature_shape_as_index.1} parent=1 // pred_fallthru
      _
    // Predicated region
    $region6: #{signature_shape_as_index.1} parent=1 // pred_check
      _
    $region7: #{signature_shape_as_index.1} parent=1 // pred_check_branch
      %21 = sbr.rel (0) target = $region9
    $region8: #{signature_shape_as_index.1} parent=1 // pred_region
      _
    $region9: #{signature_shape_as_index.1} parent=1 // pred_fallthru
      _
    // Predicated region
    $region10: #{signature_shape_as_index.1} parent=1 // pred_check
      _
    $region11: #{signature_shape_as_index.1} parent=1 // pred_check_branch
      %23 = sbr.rel (0) target = $region13
    $region12: #{signature_shape_as_index.1} parent=1 // pred_region
      %25 = vsyncadd [#allocation4], 0
      %s27 = sshll.u32 %s2, 4
      %s28 = int_to_ptr.hbm [resolvable:$true] %s27
      %s29 = sshll.u32 [#allocation6], 4
      %s30 = int_to_ptr.vmem [resolvable:$true] %s29
      %32 = dma.hbm_to_vmem [thread:$0]  %s28, 64, %s30, [#allocation4]
    $region13: #{signature_shape_as_index.1} parent=1 // pred_fallthru
      _
    // Predicated region
    $region14: #{signature_shape_as_index.1} parent=1 // pred_check
      _
    $region15: #{signature_shape_as_index.1} parent=1 // pred_check_branch
      %34 = sbr.rel (0) target = $region17
    $region16: #{signature_shape_as_index.1} parent=1 // pred_region
      %36 = dma.done [#allocation5], 16
    $region17: #{signature_shape_as_index.1} parent=1 // pred_fallthru
      _
    // Predicated region
    $region18: #{signature_shape_as_index.1} parent=1 // pred_check
      _
    $region19: #{signature_shape_as_index.1} parent=1 // pred_check_branch
      %38 = sbr.rel (0) target = $region21
    $region20: #{signature_shape_as_index.1} parent=1 // pred_region
      %40 = dma.done [#allocation4], 64
    $region21: #{signature_shape_as_index.1} parent=1 // pred_fallthru
      _
    %41 = sfence
    %v42 = vld [vmem:[#allocation6] sm:$0xf]
    %s43 = sld [smem:[#allocation3]]
    %v44 = vstv %s43
    %v45 = vmul.f32 %v44, %v42
    %s46 = sld [smem:[#allocation2]]
    %v47 = vstv %s46
    %v48 = vadd.f32 %v45, %v47
    %s49 = sld [smem:[#allocation3 + $0x1]]
    %v50 = vstv %s49
    %v51 = vmul.f32 %v50, %v42
    %53 = vrot.lane.b32.xlu0 %v51, 127
    %v54 = vpop.permute.xlu0 %53
    %v56 = vadd.f32 %v48, %v54
    %s57 = sld [smem:[#allocation3 + $0x2]]
    %v58 = vstv %s57
    %v59 = vmul.f32 %v58, %v42
    %61 = vrot.lane.b32.xlu0 %v59, 126
    %v62 = vpop.permute.xlu0 %61
    %v64 = vadd.f32 %v56, %v62
    %v65 = vxor.u32 %v64, 2147483648
    %v66 = vmul.f32 %v65, 1.442695
    %v67 = vpow.pop %v66
    %v68 = vadd.f32 %v67, 1.0
    %v69 = vrcp.pop %v68
    %v70 = vmul.f32 %v68, %v69
    %v71 = vsub.f32 1.0, %v70
    %v72 = vmul.f32 %v69, %v71
    %v73 = vadd.f32 %v69, %v72
    %vm74 = vweird.f32 %v68
    %vm75 = vweird.f32 %v69
    %vm76 = vmor %vm74, %vm75
    %v77 = vsel %vm76, %v69, %v73
    %v78 = vand.u32 2147483647, %v68
    %vm79 = vcmp.eq.f32.partialorder %v78, 8.507059e+37
    %v80 = vand.u32 %v68, 2147483648
    %v81 = vor.u32 1.1754944e-38, %v80
    %v82 = vsel %vm79, %v81, %v77
    %v83 = vmul.f32 1.0, %v82
    %85 = vset.pattern.permute.xlu0 0
    %86 = vperm.xlu0 %85, %v83
    %v87 = vpop.permute.xlu0 %86
    %v89 = vadd.f32 %v87, %v42
    %vm90 = vcmask 11264
    %91 = vst.msk [vmem:[%s3] sm:$0xf] %vm90, %v89
    // Predicated region
    $region22: #{signature_shape_as_index.1} parent=1 // pred_check
      _
    $region23: #{signature_shape_as_index.1} parent=1 // pred_check_branch
      %93 = sbr.rel (0) target = $region25
    $region24: #{signature_shape_as_index.1} parent=1 // pred_region
      _
    $region25: #{signature_shape_as_index.1} parent=1 // pred_fallthru
      _
    // Predicated region
    $region26: #{signature_shape_as_index.1} parent=1 // pred_check
      _
    $region27: #{signature_shape_as_index.1} parent=1 // pred_check_branch
      %95 = sbr.rel (0) target = $region29
    $region28: #{signature_shape_as_index.1} parent=1 // pred_region
      _
    $region29: #{signature_shape_as_index.1} parent=1 // pred_fallthru
      _
    %96 = vsyncpa [#allocation4], 1
    %97 = vsyncpa [#allocation5], 1

</llo_original>
